<compile_context>
chip_gen: v7x
topology: tpu7x:2x2x1
jax: 0.10.0
libtpu: 0.0.40
codegen_flags: <defaults>
</compile_context>

<pallas_src>
import functools

import jax
import jax.numpy as jnp
from jax.experimental import pallas as pl
from jax.experimental.pallas import tpu as pltpu


def _round_up(x, m):
    return (x + m - 1) // m * m


def _linear_kernel(x_ref, wt_ref, b_ref, o_ref):
    # x_ref : [TB, K]   (VMEM)  -- week_hist tile (K = seq_len, full depth)
    # wt_ref: [K, TN]   (VMEM)  -- pre-transposed weight tile
    # b_ref : [1, TN]   (VMEM)  -- bias tile
    # o_ref : [TB, TN]  (VMEM)  -- output tile (edge blocks store-masked by Pallas)
    acc = jnp.dot(x_ref[...], wt_ref[...], preferred_element_type=jnp.float32)
    o_ref[...] = (acc + b_ref[...]).astype(o_ref.dtype)


@functools.partial(jax.jit, static_argnames=("tb", "tn"))
def _linear_pallas(x, wt, b2, *, tb=256, tn=4096):
    """y = x @ wt + b2 with wt already [K, N] and b2 [1, N]."""
    B, K = x.shape
    Kw, N = wt.shape
    assert Kw == K and b2.shape == (1, N)

    out_dtype = jnp.promote_types(x.dtype, wt.dtype)

    # ---- tile sizing: clamp to the 8/128-aligned problem size (no blow-up) ----
    b_aligned = _round_up(B, 8)
    n_aligned = _round_up(N, 128)
    TB = min(tb, b_aligned)
    TN = min(tn, n_aligned)

    # v7x megacore: make sure there are >= 2 grid steps along a parallel axis
    # whenever the aligned problem allows it (prefer splitting N).
    if pl.cdiv(B, TB) * pl.cdiv(N, TN) < 2:
        if n_aligned >= 2 * 128:
            TN = _round_up(pl.cdiv(n_aligned, 2), 128)
        elif b_aligned >= 2 * 8:
            TB = _round_up(pl.cdiv(b_aligned, 2), 8)

    # Grid order matters: batch outer, N innermost so the x tile (i, 0) is held
    # resident across the j sweep instead of being re-fetched.
    grid = (pl.cdiv(B, TB), pl.cdiv(N, TN))

    in_bytes = jnp.dtype(x.dtype).itemsize
    w_bytes = jnp.dtype(wt.dtype).itemsize
    out_bytes = jnp.dtype(out_dtype).itemsize

    # Double-buffered VMEM working set (+ margin); raise the scoped VMEM limit
    # if needed, capped safely under v7x's 64 MiB physical VMEM.
    footprint = 2 * (
        TB * K * in_bytes + K * TN * w_bytes + TN * w_bytes + TB * TN * out_bytes
    )
    vmem_limit = int(min(max(footprint + (8 << 20), 32 << 20), 48 << 20))

    out = pl.pallas_call(
        _linear_kernel,
        out_shape=jax.ShapeDtypeStruct((B, N), out_dtype),
        grid_spec=pltpu.PrefetchScalarGridSpec(
            num_scalar_prefetch=0,
            grid=grid,
            in_specs=[
                pl.BlockSpec((TB, K), lambda i, j: (i, 0)),
                pl.BlockSpec((K, TN), lambda i, j: (0, j)),
                pl.BlockSpec((1, TN), lambda i, j: (0, j)),
            ],
            out_specs=pl.BlockSpec((TB, TN), lambda i, j: (i, j)),
        ),
        compiler_params=pltpu.CompilerParams(
            # Both grid axes are fully independent -> megacore sharding on v7x,
            # harmless on v5e/v6e.
            dimension_semantics=("parallel", "parallel"),
            vmem_limit_bytes=vmem_limit,
        ),
        cost_estimate=pl.CostEstimate(
            flops=2 * B * K * N,
            transcendentals=0,
            bytes_accessed=(
                B * K * in_bytes          # x
                + K * N * w_bytes         # weight
                + N * w_bytes             # bias
                + B * N * out_bytes       # output (dominant stream when B > K)
            ),
        ),
    )(x, wt, b2)
    return out


class HMModel2:
    """JAX/Pallas port of the PyTorch HMModel2 (a single nn.Linear on week_hist)."""

    # Below this many output elements a single fused XLA dot is faster than any
    # pallas_call configuration (pad ops + launch overhead dominate).
    _SMALL_BYPASS_ELEMS = 1 << 16

    def __init__(self, weight, bias):
        # weight: [num_article_ids, seq_len], bias: [num_article_ids]
        weight = jnp.asarray(weight)
        bias = jnp.asarray(bias)
        assert weight.ndim == 2 and bias.shape == (weight.shape[0],)
        # Hoisted layout prep (done ONCE, not per forward): [K, N] weight, [1, N] bias.
        self.weight = weight
        self.bias = bias
        self.wt = jnp.asarray(weight.T)          # [seq_len, num_article_ids]
        self.b2 = bias.reshape(1, -1)            # [1, num_article_ids]

    def __call__(self, inputs, *, tb=256, tn=4096, force_pallas=False):
        article_hist, week_hist = inputs[0], inputs[1]
        del article_hist  # unused, exactly like the reference forward
        week_hist = jnp.asarray(week_hist)
        B, K = week_hist.shape
        N = self.wt.shape[1]
        assert self.wt.shape[0] == K

        if (B * N <= self._SMALL_BYPASS_ELEMS) and not force_pallas:
            # Tiny-problem bypass: one fused XLA dot.
            return week_hist @ self.wt + self.b2

        return _linear_pallas(week_hist, self.wt, self.b2, tb=tb, tn=tn)


if __name__ == "__main__":
    key = jax.random.PRNGKey(0)
    k1, k2, k3, k4 = jax.random.split(key, 4)

    # data_config: seq_len=8, num_article_ids=32; batch=2
    B, seq_len, num_article_ids = 2, 8, 32

    # Deterministic synthetic "parameters" (not loaded from a checkpoint).
    weight = jax.random.normal(k1, (num_article_ids, seq_len), jnp.float32) * 0.1
    bias = jax.random.normal(k2, (num_article_ids,), jnp.float32) * 0.1

    # Inputs: (article_hist, week_hist) — only week_hist is used by forward.
    article_hist = jax.random.randint(k3, (B, seq_len), 0, num_article_ids)
    week_hist = jax.random.normal(k4, (B, seq_len), jnp.float32)

    model = HMModel2(weight, bias)
    ref = week_hist @ weight.T + bias

    # 1) Default dispatch at demo size -> plain-XLA bypass path.
    out_xla = jax.block_until_ready(model((article_hist, week_hist)))
    assert out_xla.shape == (B, num_article_ids)
    assert jnp.allclose(out_xla, ref, atol=1e-5, rtol=1e-5)

    # 2) Force the Pallas kernel at the same small shape (edge masking on both axes).
    out_pl = jax.block_until_ready(model((article_hist, week_hist), force_pallas=True))
    assert out_pl.shape == (B, num_article_ids)
    assert jnp.allclose(out_pl, ref, atol=1e-5, rtol=1e-5)

    # 3) A non-aligned, slightly larger shape through the Pallas path:
    #    exercises cdiv-grid edge masking and the megacore N-split, with no
    #    padded output or slice-back.
    k5, k6, k7 = jax.random.split(k4, 3)
    B2, N2 = 44, 300
    weight2 = jax.random.normal(k5, (N2, seq_len), jnp.float32) * 0.1
    bias2 = jax.random.normal(k6, (N2,), jnp.float32) * 0.1
    week_hist2 = jax.random.normal(k7, (B2, seq_len), jnp.float32)
    model2 = HMModel2(weight2, bias2)
    out2 = jax.block_until_ready(model2((None, week_hist2), force_pallas=True))
    ref2 = week_hist2 @ weight2.T + bias2
    assert out2.shape == (B2, N2)
    assert jnp.allclose(out2, ref2, atol=1e-4, rtol=1e-5)

    print("KERNEL_OK")
</pallas_src>

<mosaic_0001>
module attributes {stable_mosaic.version = 11 : i64} {
  func.func @_linear_kernel(%arg0: i32, %arg1: i32, %arg2: memref<8x8xf32, #tpu.memory_space<vmem>>, %arg3: memref<8x128xf32, #tpu.memory_space<vmem>>, %arg4: memref<1x128xf32, #tpu.memory_space<vmem>>, %arg5: memref<8x128xf32, #tpu.memory_space<vmem>>) attributes {dimension_semantics = [#tpu.dimension_semantics<parallel>, #tpu.dimension_semantics<parallel>], iteration_bounds = array<i64: 1, 1>, scalar_prefetch = 0 : i64, scratch_operands = 0 : i64, tpu.core_type = #tpu.core_type<tc>, window_params = [{transform_indices = @transform_0, window_bounds = array<i64: 8, 8>}, {transform_indices = @transform_1, window_bounds = array<i64: 8, 128>}, {transform_indices = @transform_2, window_bounds = array<i64: 1, 128>}, {transform_indices = @transform_3, window_bounds = array<i64: 8, 128>}]} {
    %c0 = arith.constant 0 : index
    %c0_0 = arith.constant 0 : index
    %0 = vector.load %arg2[%c0, %c0_0] : memref<8x8xf32, #tpu.memory_space<vmem>>, vector<8x8xf32>
    %c0_1 = arith.constant 0 : index
    %c0_2 = arith.constant 0 : index
    %1 = vector.load %arg3[%c0_1, %c0_2] : memref<8x128xf32, #tpu.memory_space<vmem>>, vector<8x128xf32>
    %cst = arith.constant dense<0.000000e+00> : vector<8x128xf32>
    %2 = tpu.matmul %0, %1, %cst {dimension_numbers = #tpu.dot_dimension_numbers<[1], [0], [0], [1], [0, 0, 1, 1], [], []>} : vector<8x8xf32>, vector<8x128xf32>, vector<8x128xf32> -> vector<8x128xf32>
    %c0_3 = arith.constant 0 : index
    %c0_4 = arith.constant 0 : index
    %3 = vector.load %arg4[%c0_3, %c0_4] : memref<1x128xf32, #tpu.memory_space<vmem>>, vector<1x128xf32>
    %4 = vector.broadcast %3 : vector<1x128xf32> to vector<8x128xf32>
    %5 = arith.addf %2, %4 : vector<8x128xf32>
    %c0_5 = arith.constant 0 : index
    %c0_6 = arith.constant 0 : index
    %6 = vector.load %arg5[%c0_5, %c0_6] : memref<8x128xf32, #tpu.memory_space<vmem>>, vector<8x128xf32>
    tpu.vector_store %arg5[%c0_5, %c0_6], %5 {strides = array<i32>} : memref<8x128xf32, #tpu.memory_space<vmem>>, vector<8x128xf32>,
    return
  }
  func.func @transform_0(%arg0: i32, %arg1: i32) -> (i32, i32) {
    %c0_i32 = arith.constant 0 : i32
    %c0_i32_0 = arith.constant 0 : i32
    return %arg0, %c0_i32 : i32, i32
  }
  func.func @transform_1(%arg0: i32, %arg1: i32) -> (i32, i32) {
    %c0_i32 = arith.constant 0 : i32
    %c0_i32_0 = arith.constant 0 : i32
    return %c0_i32, %arg1 : i32, i32
  }
  func.func @transform_2(%arg0: i32, %arg1: i32) -> (i32, i32) {
    %c0_i32 = arith.constant 0 : i32
    %c0_i32_0 = arith.constant 0 : i32
    return %c0_i32, %arg1 : i32, i32
  }
  func.func @transform_3(%arg0: i32, %arg1: i32) -> (i32, i32) {
    %c0_i32 = arith.constant 0 : i32
    return %arg0, %arg1 : i32, i32
  }
}

</mosaic_0001>

<llo_original>
// kernel: _linear_pallas.1
$region0: #{_linear_pallas.1}
  #allocation0 [shape = 'u32[]', space=smem, size = 0x4, offset = 0x4, fixed_abs, tag = 'smem constant byte address 0x4 - core index']
  #allocation1 [shape = 'u32[144,128]{1,0:T(1,128)}', space=vmem, size = 0x12000, scoped, tag = 'internal scratch']
  %s0 = inlined_call_operand.hbm [shape: f32[2,8], index: 0, kind: input, shape index: {}]
  %s1 = inlined_call_operand.hbm [shape: f32[8,32], index: 1, kind: input, shape index: {}]
  %s2 = inlined_call_operand.vmem [shape: f32[1,32], index: 2, kind: input, shape index: {}]
  %s3 = inlined_call_operand.hbm [shape: f32[2,32], index: 3, kind: output, shape index: {}]
  %s4 = sld [smem:[#allocation0]]
  $region30: #{_linear_pallas.1} parent=0
    _
  %s6 = ssub.s32 1, %s4
  %s7 = scalar_select 0, %s6, %s4
  $region1: #{_linear_pallas.1} parent=0
    #allocation2 [shape = 'u8[4096]{0}', space=vmem, size = 0x1000, scoped, tag = 'input window, operand 0, single buffered']
    #allocation3 [shape = 's32[1]{0}', space=sflag, size = 0x4, scoped, tag = 'scoped memory for _linear_pallas.1']
    #allocation4 [shape = 's32[1]{0}', space=sflag, size = 0x4, scoped, tag = 'scoped memory for _linear_pallas.1']
    #allocation5 [shape = 'u8[4096]{0}', space=vmem, size = 0x1000, scoped, tag = 'input window, operand 1, single buffered']
    #allocation6 [shape = 's32[1]{0}', space=sflag, size = 0x4, scoped, tag = 'scoped memory for _linear_pallas.1']
    #allocation7 [shape = 'u8[4096]{0}', space=vmem, size = 0x1000, scoped, tag = 'output window, operand 0, single buffered']
    %8 = vsyncpa [#allocation3], 0
    %9 = vsyncpa [#allocation6], 0
    %10 = vsyncpa [#allocation4], 0
    // Predicated region
    $region2: #{_linear_pallas.1} parent=1 // pred_check
      _
    $region3: #{_linear_pallas.1} parent=1 // pred_check_branch
      %12 = sbr.rel (0) target = $region5
    $region4: #{_linear_pallas.1} parent=1 // pred_region
      %s14 = ssub.s32 128, 32
      %15 = vsyncadd [#allocation3], %s14
      %s16 = sshll.u32 [#allocation2], 4
      %s17 = int_to_ptr.vmem [resolvable:$true] %s16
      %22 = dma.hbm_to_vmem [thread:$0]  %s0, 32, %s17, [#allocation3], 32, 32, 2
    $region5: #{_linear_pallas.1} parent=1 // pred_fallthru
      _
    // Predicated region
    $region6: #{_linear_pallas.1} parent=1 // pred_check
      _
    $region7: #{_linear_pallas.1} parent=1 // pred_check_branch
      %24 = sbr.rel (0) target = $region9
    $region8: #{_linear_pallas.1} parent=1 // pred_region
      %s26 = ssub.s32 128, 128
      %27 = vsyncadd [#allocation6], %s26
      %s29 = sshll.u32 [#allocation5], 4
      %s30 = int_to_ptr.vmem [resolvable:$true] %s29
      %32 = dma.hbm_to_vmem [thread:$0]  %s1, 128, %s30, [#allocation6]
    $region9: #{_linear_pallas.1} parent=1 // pred_fallthru
      _
    // Predicated region
    $region10: #{_linear_pallas.1} parent=1 // pred_check
      _
    $region11: #{_linear_pallas.1} parent=1 // pred_check_branch
      %34 = sbr.rel (0) target = $region13
    $region12: #{_linear_pallas.1} parent=1 // pred_region
      _
    $region13: #{_linear_pallas.1} parent=1 // pred_fallthru
      _
    // Predicated region
    $region14: #{_linear_pallas.1} parent=1 // pred_check
      _
    $region15: #{_linear_pallas.1} parent=1 // pred_check_branch
      %36 = sbr.rel (0) target = $region17
    $region16: #{_linear_pallas.1} parent=1 // pred_region
      %37 = dma.done [#allocation3], 128
    $region17: #{_linear_pallas.1} parent=1 // pred_fallthru
      _
    // Predicated region
    $region18: #{_linear_pallas.1} parent=1 // pred_check
      _
    $region19: #{_linear_pallas.1} parent=1 // pred_check_branch
      %39 = sbr.rel (0) target = $region21
    $region20: #{_linear_pallas.1} parent=1 // pred_region
      %40 = dma.done [#allocation6], 128
    $region21: #{_linear_pallas.1} parent=1 // pred_fallthru
      _
    %v41 = vld [vmem:[#allocation2] sm:$0xff]
    %v42 = vld [vmem:[#allocation5] sm:$0xff]
    %v43 = vld [vmem:[%s2] sm:$0x1]
    %v45 = vlaneseq
    %v46 = vshrl.u32 %v45, 7
    %v47 = vsub.s32 0, %v46
    %v48 = vrot.slane %v43, %v47
    %vm50 = vcmask 64512
    %v52 = vsel %vm50, %v41, 0
    %54 = vmatprep.subr.mxu0 0.0
    %55 = vmatpush1.msra.mxu0 %v42
    %56 = vmatprep.subr.mxu0 0.0
    %57 = vmatpush1.msra.mxu0 0.0
    %58 = vmatprep.subr.mxu0 0.0
    %59 = vmatpush1.msra.mxu0 0.0
    %60 = vmatprep.subr.mxu0 0.0
    %61 = vmatpush1.msra.mxu0 0.0
    %62 = vmatprep.subr.mxu0 0.0
    %63 = vmatpush1.msra.mxu0 0.0
    %64 = vmatprep.subr.mxu0 0.0
    %65 = vmatpush1.msra.mxu0 0.0
    %66 = vmatprep.subr.mxu0 0.0
    %67 = vmatpush1.msra.mxu0 0.0
    %68 = vmatprep.subr.mxu0 0.0
    %69 = vmatpush1.msra.mxu0 0.0
    %70 = vmatprep.subr.mxu0 0.0
    %71 = vmatpush1.msra.mxu0 0.0
    %72 = vmatprep.subr.mxu0 0.0
    %73 = vmatpush1.msra.mxu0 0.0
    %74 = vmatprep.subr.mxu0 0.0
    %75 = vmatpush1.msra.mxu0 0.0
    %76 = vmatprep.subr.mxu0 0.0
    %77 = vmatpush1.msra.mxu0 0.0
    %78 = vmatprep.subr.mxu0 0.0
    %79 = vmatpush1.msra.mxu0 0.0
    %80 = vmatprep.subr.mxu0 0.0
    %81 = vmatpush1.msra.mxu0 0.0
    %82 = vmatprep.subr.mxu0 0.0
    %83 = vmatpush1.msra.mxu0 0.0
    %84 = vmatprep.subr.mxu0 0.0
    %85 = vmatpush1.msra.mxu0 0.0
    %86 = vmatprep.subr.mxu0 0.0
    %87 = vmatpush1.msra.mxu0 0.0
    %88 = vmatprep.subr.mxu0 0.0
    %89 = vmatpush1.msra.mxu0 0.0
    %90 = vmatprep.subr.mxu0 0.0
    %91 = vmatpush1.msra.mxu0 0.0
    %92 = vmatprep.subr.mxu0 0.0
    %93 = vmatpush1.msra.mxu0 0.0
    %94 = vmatprep.subr.mxu0 0.0
    %95 = vmatpush1.msra.mxu0 0.0
    %96 = vmatprep.subr.mxu0 0.0
    %97 = vmatpush1.msra.mxu0 0.0
    %98 = vmatprep.subr.mxu0 0.0
    %99 = vmatpush1.msra.mxu0 0.0
    %100 = vmatprep.subr.mxu0 0.0
    %101 = vmatpush1.msra.mxu0 0.0
    %102 = vmatprep.subr.mxu0 0.0
    %103 = vmatpush1.msra.mxu0 0.0
    %104 = vmatprep.subr.mxu0 0.0
    %105 = vmatpush1.msra.mxu0 0.0
    %106 = vmatprep.subr.mxu0 0.0
    %107 = vmatpush1.msra.mxu0 0.0
    %108 = vmatprep.subr.mxu0 0.0
    %109 = vmatpush1.msra.mxu0 0.0
    %110 = vmatprep.subr.mxu0 0.0
    %111 = vmatpush1.msra.mxu0 0.0
    %112 = vmatprep.subr.mxu0 0.0
    %113 = vmatpush1.msra.mxu0 0.0
    %114 = vmatprep.subr.mxu0 0.0
    %115 = vmatpush1.msra.mxu0 0.0
    %116 = vmatprep.subr.mxu0 0.0
    %117 = vmatpush1.msra.mxu0 0.0
    %118 = vmatprep.mubr.f32.mxu0 0.0
    %119 = vmatmul.mubr.f32.gmra.mrb[0].mxu0 %v52
    %v120 = vpop.f32.mrb[0].mxu0
    %v121 = vadd.f32 %v48, %v120
    %v122 = vpop.f32.mrb[0].mxu0
    %123 = vdwg.mxu0
    %124 = vst [vmem:[#allocation7] sm:$0xff] %v121
    // Predicated region
    $region22: #{_linear_pallas.1} parent=1 // pred_check
      _
    $region23: #{_linear_pallas.1} parent=1 // pred_check_branch
      %126 = sbr.rel (0) target = $region25
    $region24: #{_linear_pallas.1} parent=1 // pred_region
      %s128 = ssub.s32 128, 32
      %129 = vsyncadd [#allocation4], %s128
      %s130 = sshll.u32 [#allocation7], 4
      %s131 = int_to_ptr.vmem [resolvable:$true] %s130
      %136 = dma.vmem_to_hbm [thread:$0]  %s131, 32, %s3, [#allocation4], 32, 32, 2
    $region25: #{_linear_pallas.1} parent=1 // pred_fallthru
      _
    // Predicated region
    $region26: #{_linear_pallas.1} parent=1 // pred_check
      _
    $region27: #{_linear_pallas.1} parent=1 // pred_check_branch
      %138 = sbr.rel (0) target = $region29
    $region28: #{_linear_pallas.1} parent=1 // pred_region
      %139 = dma.done [#allocation4], 128
    $region29: #{_linear_pallas.1} parent=1 // pred_fallthru
      _
    %140 = vsyncpa [#allocation3], 1
    %141 = vsyncpa [#allocation6], 1
    %142 = vsyncpa [#allocation4], 1

</llo_original>
